<compile_context>
chip_gen: v6e
topology: v6e:2x2x1
jax: 0.10.0
libtpu: 0.0.40
codegen_flags: <defaults>
</compile_context>

<pallas_src>
import math
from functools import partial

import jax
import jax.numpy as jnp
from jax import lax
from jax.experimental import pallas as pl
from jax.experimental.pallas import tpu as pltpu

F32 = jnp.float32


# ----------------------------- Pallas kernel --------------------------------

def _merge_ln_gemm_kernel(x_ref, we_ref, wo_ref, b_ref, o_ref, *, eps):
    """Fused 2x2-merge + LayerNorm + reduction GEMM for one tile.

    x_ref : (th, 2, tw, 2C)  rows are (b, h2) pairs, dim1 is kh in {0,1},
                             channels are [kw=0 block | kw=1 block]
    we_ref: (2C, N)          gamma-folded weight rows for the kh=0 slab ([x0|x2])
    wo_ref: (2C, N)          gamma-folded weight rows for the kh=1 slab ([x1|x3])
    b_ref : (1, N)           folded bias  beta @ W
    o_ref : (th, tw, N)
    """
    th, _, tw, k2 = x_ref.shape
    xt = x_ref[...]
    # kh-plane split: leading-dim select + sublane-preserving reshape
    # (pure in-VMEM relayout; free when tw % 8 == 0).
    xe = xt[:, 0, :, :].reshape(th * tw, k2).astype(jnp.float32)   # [x0 | x2]
    xo = xt[:, 1, :, :].reshape(th * tw, k2).astype(jnp.float32)   # [x1 | x3]

    # One-pass LayerNorm statistics over the full 4C channels (both slabs).
    inv_k = 1.0 / (2 * k2)
    s = jnp.sum(xe, axis=-1, keepdims=True) + jnp.sum(xo, axis=-1, keepdims=True)
    sq = (jnp.sum(xe * xe, axis=-1, keepdims=True)
          + jnp.sum(xo * xo, axis=-1, keepdims=True))
    mu = s * inv_k
    var = sq * inv_k - mu * mu            # biased variance == nn.LayerNorm
    inv = lax.rsqrt(var + eps)

    we = we_ref[...]
    wo = wo_ref[...]
    mm_dtype = we.dtype                   # bf16 when the wrapper pre-casts weights
    xen = ((xe - mu) * inv).astype(mm_dtype)
    xon = ((xo - mu) * inv).astype(mm_dtype)

    acc = jnp.dot(xen, we, preferred_element_type=jnp.float32)
    acc = acc + jnp.dot(xon, wo, preferred_element_type=jnp.float32)
    acc = acc + b_ref[...]                # + beta @ W
    o_ref[...] = acc.reshape(th, tw, acc.shape[-1]).astype(o_ref.dtype)


# ------------------------------ wrapper --------------------------------------

def patch_merging_2d(x, gamma, beta, w, *, eps=1e-5, use_bf16_matmul=True,
                     vmem_budget_bytes=12 * 1024 * 1024):
    """PatchMerging2D forward.

    x:      (B, H, W, C)
    gamma:  (4C,)  LayerNorm weight
    beta:   (4C,)  LayerNorm bias
    w:      (4C, 2C) reduction weight, input-major (transpose of the PyTorch
            nn.Linear (2C, 4C) weight).
    returns (B, H//2, W//2, 2C)
    """
    B, H, W, C = x.shape
    H2, W2 = H // 2, W // 2
    if H % 2 or W % 2:                    # SHAPE_FIX path: crop to even extent
        x = x[:, :2 * H2, :2 * W2, :]

    assert w.shape[0] == 4 * C and gamma.shape[0] == 4 * C and beta.shape[0] == 4 * C
    K2 = 2 * C                            # channels per (even/odd h) slab
    N = w.shape[1]                        # 2C
    R = B * H2                            # one "row" per (b, h2)

    # Free (metadata-only) view: element [r, kh, w2, :] =
    #   concat(x[b, 2*h2+kh, 2*w2, :], x[b, 2*h2+kh, 2*w2+1, :])
    xr = x.reshape(R, 2, W2, K2)

    # Fold LayerNorm affine into the weight, split into even/odd-h row blocks.
    gamma = gamma.astype(F32)
    beta = beta.astype(F32)
    wf = w.astype(F32)
    wp = gamma[:, None] * wf                                    # gamma folded
    w_even = jnp.concatenate([wp[0:C], wp[2 * C:3 * C]], axis=0)   # rows for [x0|x2]
    w_odd = jnp.concatenate([wp[C:2 * C], wp[3 * C:4 * C]], axis=0)  # rows for [x1|x3]
    bias = (beta @ wf).reshape(1, N)                            # beta folded
    mm_dtype = jnp.bfloat16 if use_bf16_matmul else F32
    w_even = w_even.astype(mm_dtype)
    w_odd = w_odd.astype(mm_dtype)

    # VMEM-budgeted tile selection (double-buffered inputs/outputs + weights).
    xb = jnp.dtype(x.dtype).itemsize
    wb = jnp.dtype(mm_dtype).itemsize
    tw = W2 if W2 <= 256 else 256                      # col tile (mult. of 8 or full)
    fixed = 2 * (2 * K2 * N * wb) + 2 * N * 4          # both weights + bias
    per_px = 2 * (2 * K2 * xb) + 2 * N * 4             # x (both slabs) in + out
    max_px = max(tw, (vmem_budget_bytes - fixed) // per_px)
    th = int(min(R, max(1, max_px // tw), 2048))
    if pl.cdiv(R, th) * pl.cdiv(W2, tw) < 2 and R > 1:
        th = pl.cdiv(R, 2)                             # >=2 grid steps -> dual-TC on v7x
    grid = (pl.cdiv(R, th), pl.cdiv(W2, tw))

    out = pl.pallas_call(
        partial(_merge_ln_gemm_kernel, eps=eps),
        out_shape=jax.ShapeDtypeStruct((R, W2, N), x.dtype),
        grid=grid,
        in_specs=[
            pl.BlockSpec((th, 2, tw, K2), lambda i, j: (i, 0, j, 0)),  # activation tile
            pl.BlockSpec((K2, N), lambda i, j: (0, 0)),                # W' even-h rows
            pl.BlockSpec((K2, N), lambda i, j: (0, 0)),                # W' odd-h rows
            pl.BlockSpec((1, N), lambda i, j: (0, 0)),                 # folded bias
        ],
        out_specs=pl.BlockSpec((th, tw, N), lambda i, j: (i, j, 0)),
        compiler_params=pltpu.CompilerParams(
            dimension_semantics=("parallel", "parallel")),
    )(xr, w_even, w_odd, bias)

    return out.reshape(B, H2, W2, N)


# --------------------------- pure-JAX reference ------------------------------

def _reference(x, gamma, beta, w, eps=1e-5):
    H2, W2 = x.shape[1] // 2, x.shape[2] // 2
    x = x[:, :2 * H2, :2 * W2, :]
    x0 = x[:, 0::2, 0::2, :]
    x1 = x[:, 1::2, 0::2, :]
    x2 = x[:, 0::2, 1::2, :]
    x3 = x[:, 1::2, 1::2, :]
    xc = jnp.concatenate([x0, x1, x2, x3], axis=-1)
    mu = jnp.mean(xc, axis=-1, keepdims=True)
    var = jnp.mean((xc - mu) ** 2, axis=-1, keepdims=True)
    xn = (xc - mu) / jnp.sqrt(var + eps) * gamma + beta
    return jnp.einsum("bhwk,kn->bhwn", xn, w)


# --------------------------------- main --------------------------------------

if __name__ == "__main__":
    key = jax.random.PRNGKey(0)
    kx, kw, kx2 = jax.random.split(key, 3)

    # dim=64 -> K=4C=256, N=2C=128 (lane-dense output)
    B, H, W, C = 2, 16, 16, 64
    x = jax.random.normal(kx, (B, H, W, C), F32)
    gamma = jnp.linspace(0.5, 1.5, 4 * C, dtype=F32)       # non-trivial affine
    beta = jnp.linspace(-0.1, 0.1, 4 * C, dtype=F32)
    bound = 1.0 / math.sqrt(4 * C)                         # nn.Linear default init range
    w = jax.random.uniform(kw, (4 * C, 2 * C), F32, minval=-bound, maxval=bound)

    ref = _reference(x, gamma, beta, w)

    # Default path: bf16 MXU with f32 accumulation.
    out_bf16 = jax.block_until_ready(
        jax.jit(partial(patch_merging_2d, use_bf16_matmul=True))(x, gamma, beta, w))
    assert out_bf16.shape == (B, H // 2, W // 2, 2 * C)
    assert bool(jnp.all(jnp.isfinite(out_bf16)))
    assert bool(jnp.allclose(out_bf16, ref, rtol=2e-2, atol=2e-2)), \
        float(jnp.max(jnp.abs(out_bf16 - ref)))

    # Exact f32 path: tight check of the fused merge + LN + GEMM.
    out_f32 = jax.block_until_ready(
        jax.jit(partial(patch_merging_2d, use_bf16_matmul=False))(x, gamma, beta, w))
    assert bool(jnp.allclose(out_f32, ref, rtol=1e-3, atol=1e-3)), \
        float(jnp.max(jnp.abs(out_f32 - ref)))

    # Ragged row grid: the partial last block is clipped by Pallas (no pad/slice).
    Br, Hr, Wr, Cr = 1, 26, 16, 64
    xr_in = jax.random.normal(kx2, (Br, Hr, Wr, Cr), F32)
    out_r = jax.block_until_ready(
        jax.jit(partial(patch_merging_2d, use_bf16_matmul=False))(xr_in, gamma, beta, w))
    ref_r = _reference(xr_in, gamma, beta, w)
    assert out_r.shape == (Br, Hr // 2, Wr // 2, 2 * Cr)
    assert bool(jnp.allclose(out_r, ref_r, rtol=1e-3, atol=1e-3)), \
        float(jnp.max(jnp.abs(out_r - ref_r)))

    print("KERNEL_OK")
</pallas_src>

<mosaic_0001>
module attributes {stable_mosaic.version = 11 : i64} {
  func.func @_merge_ln_gemm_kernel(%arg0: i32, %arg1: i32, %arg2: memref<8x2x8x128xf32, #tpu.memory_space<vmem>>, %arg3: memref<128x128xbf16, #tpu.memory_space<vmem>>, %arg4: memref<128x128xbf16, #tpu.memory_space<vmem>>, %arg5: memref<1x128xf32, #tpu.memory_space<vmem>>, %arg6: memref<8x8x128xf32, #tpu.memory_space<vmem>>) attributes {dimension_semantics = [#tpu.dimension_semantics<parallel>, #tpu.dimension_semantics<parallel>], iteration_bounds = array<i64: 2, 1>, scalar_prefetch = 0 : i64, scratch_operands = 0 : i64, tpu.core_type = #tpu.core_type<tc>, window_params = [{transform_indices = @transform_0, window_bounds = array<i64: 8, 2, 8, 128>}, {pipeline_mode = #tpu.pipeline_mode<synchronous>, transform_indices = @transform_1, window_bounds = array<i64: 128, 128>}, {pipeline_mode = #tpu.pipeline_mode<synchronous>, transform_indices = @transform_2, window_bounds = array<i64: 128, 128>}, {pipeline_mode = #tpu.pipeline_mode<synchronous>, transform_indices = @transform_3, window_bounds = array<i64: 1, 128>}, {transform_indices = @transform_4, window_bounds = array<i64: 8, 8, 128>}]} {
    %c0 = arith.constant 0 : index
    %c0_0 = arith.constant 0 : index
    %c0_1 = arith.constant 0 : index
    %c0_2 = arith.constant 0 : index
    %0 = vector.load %arg2[%c0, %c0_0, %c0_1, %c0_2] : memref<8x2x8x128xf32, #tpu.memory_space<vmem>>, vector<8x2x8x128xf32>
    %1 = vector.extract_strided_slice %0 {offsets = [0, 0, 0, 0], sizes = [8, 1, 8, 128], strides = [1, 1, 1, 1]} : vector<8x2x8x128xf32> to vector<8x1x8x128xf32>
    %2 = vector.shape_cast %1 : vector<8x1x8x128xf32> to vector<8x8x128xf32>
    %3 = vector.shape_cast %2 : vector<8x8x128xf32> to vector<64x128xf32>
    %4 = vector.extract_strided_slice %0 {offsets = [0, 1, 0, 0], sizes = [8, 1, 8, 128], strides = [1, 1, 1, 1]} : vector<8x2x8x128xf32> to vector<8x1x8x128xf32>
    %5 = vector.shape_cast %4 : vector<8x1x8x128xf32> to vector<8x8x128xf32>
    %6 = vector.shape_cast %5 : vector<8x8x128xf32> to vector<64x128xf32>
    %cst = arith.constant dense<0.000000e+00> : vector<64xf32>
    %7 = vector.multi_reduction <add>, %3, %cst [1] : vector<64x128xf32> to vector<64xf32>
    %8 = vector.shape_cast %7 : vector<64xf32> to vector<64x1xf32>
    %cst_3 = arith.constant dense<0.000000e+00> : vector<64xf32>
    %9 = vector.multi_reduction <add>, %6, %cst_3 [1] : vector<64x128xf32> to vector<64xf32>
    %10 = vector.shape_cast %9 : vector<64xf32> to vector<64x1xf32>
    %11 = arith.addf %8, %10 : vector<64x1xf32>
    %12 = arith.mulf %3, %3 : vector<64x128xf32>
    %cst_4 = arith.constant dense<0.000000e+00> : vector<64xf32>
    %13 = vector.multi_reduction <add>, %12, %cst_4 [1] : vector<64x128xf32> to vector<64xf32>
    %14 = vector.shape_cast %13 : vector<64xf32> to vector<64x1xf32>
    %15 = arith.mulf %6, %6 : vector<64x128xf32>
    %cst_5 = arith.constant dense<0.000000e+00> : vector<64xf32>
    %16 = vector.multi_reduction <add>, %15, %cst_5 [1] : vector<64x128xf32> to vector<64xf32>
    %17 = vector.shape_cast %16 : vector<64xf32> to vector<64x1xf32>
    %18 = arith.addf %14, %17 : vector<64x1xf32>
    %cst_6 = arith.constant 3.906250e-03 : f32
    %19 = vector.broadcast %cst_6 : f32 to vector<64x1xf32>
    %20 = arith.mulf %11, %19 : vector<64x1xf32>
    %cst_7 = arith.constant 3.906250e-03 : f32
    %21 = vector.broadcast %cst_7 : f32 to vector<64x1xf32>
    %22 = arith.mulf %18, %21 : vector<64x1xf32>
    %23 = arith.mulf %20, %20 : vector<64x1xf32>
    %24 = arith.subf %22, %23 : vector<64x1xf32>
    %cst_8 = arith.constant 9.99999974E-6 : f32
    %25 = vector.broadcast %cst_8 : f32 to vector<64x1xf32>
    %26 = arith.addf %24, %25 : vector<64x1xf32>
    %27 = math.rsqrt %26 : vector<64x1xf32>
    %c0_9 = arith.constant 0 : index
    %c0_10 = arith.constant 0 : index
    %28 = vector.load %arg3[%c0_9, %c0_10] : memref<128x128xbf16, #tpu.memory_space<vmem>>, vector<128x128xbf16>
    %c0_11 = arith.constant 0 : index
    %c0_12 = arith.constant 0 : index
    %29 = vector.load %arg4[%c0_11, %c0_12] : memref<128x128xbf16, #tpu.memory_space<vmem>>, vector<128x128xbf16>
    %30 = vector.broadcast %20 : vector<64x1xf32> to vector<64x128xf32>
    %31 = arith.subf %3, %30 : vector<64x128xf32>
    %32 = vector.broadcast %27 : vector<64x1xf32> to vector<64x128xf32>
    %33 = arith.mulf %31, %32 : vector<64x128xf32>
    %34 = arith.truncf %33 : vector<64x128xf32> to vector<64x128xbf16>
    %35 = vector.broadcast %20 : vector<64x1xf32> to vector<64x128xf32>
    %36 = arith.subf %6, %35 : vector<64x128xf32>
    %37 = vector.broadcast %27 : vector<64x1xf32> to vector<64x128xf32>
    %38 = arith.mulf %36, %37 : vector<64x128xf32>
    %39 = arith.truncf %38 : vector<64x128xf32> to vector<64x128xbf16>
    %cst_13 = arith.constant dense<0.000000e+00> : vector<64x128xf32>
    %40 = tpu.matmul %34, %28, %cst_13 {dimension_numbers = #tpu.dot_dimension_numbers<[1], [0], [0], [1], [0, 0, 1, 1], [], []>} : vector<64x128xbf16>, vector<128x128xbf16>, vector<64x128xf32> -> vector<64x128xf32>
    %cst_14 = arith.constant dense<0.000000e+00> : vector<64x128xf32>
    %41 = tpu.matmul %39, %29, %cst_14 {dimension_numbers = #tpu.dot_dimension_numbers<[1], [0], [0], [1], [0, 0, 1, 1], [], []>} : vector<64x128xbf16>, vector<128x128xbf16>, vector<64x128xf32> -> vector<64x128xf32>
    %42 = arith.addf %40, %41 : vector<64x128xf32>
    %c0_15 = arith.constant 0 : index
    %c0_16 = arith.constant 0 : index
    %43 = vector.load %arg5[%c0_15, %c0_16] : memref<1x128xf32, #tpu.memory_space<vmem>>, vector<1x128xf32>
    %44 = vector.broadcast %43 : vector<1x128xf32> to vector<64x128xf32>
    %45 = arith.addf %42, %44 : vector<64x128xf32>
    %46 = vector.shape_cast %45 : vector<64x128xf32> to vector<8x8x128xf32>
    %c0_17 = arith.constant 0 : index
    %c0_18 = arith.constant 0 : index
    %c0_19 = arith.constant 0 : index
    %47 = vector.load %arg6[%c0_17, %c0_18, %c0_19] : memref<8x8x128xf32, #tpu.memory_space<vmem>>, vector<8x8x128xf32>
    tpu.vector_store %arg6[%c0_17, %c0_18, %c0_19], %46 {strides = array<i32>} : memref<8x8x128xf32, #tpu.memory_space<vmem>>, vector<8x8x128xf32>,
    return
  }
  func.func @transform_0(%arg0: i32, %arg1: i32) -> (i32, i32, i32, i32) {
    %c0_i32 = arith.constant 0 : i32
    %c0_i32_0 = arith.constant 0 : i32
    %c0_i32_1 = arith.constant 0 : i32
    return %arg0, %c0_i32, %arg1, %c0_i32_0 : i32, i32, i32, i32
  }
  func.func @transform_1(%arg0: i32, %arg1: i32) -> (i32, i32) {
    %c0_i32 = arith.constant 0 : i32
    %c0_i32_0 = arith.constant 0 : i32
    %c0_i32_1 = arith.constant 0 : i32
    return %c0_i32, %c0_i32_0 : i32, i32
  }
  func.func @transform_2(%arg0: i32, %arg1: i32) -> (i32, i32) {
    %c0_i32 = arith.constant 0 : i32
    %c0_i32_0 = arith.constant 0 : i32
    %c0_i32_1 = arith.constant 0 : i32
    return %c0_i32, %c0_i32_0 : i32, i32
  }
  func.func @transform_3(%arg0: i32, %arg1: i32) -> (i32, i32) {
    %c0_i32 = arith.constant 0 : i32
    %c0_i32_0 = arith.constant 0 : i32
    %c0_i32_1 = arith.constant 0 : i32
    return %c0_i32, %c0_i32_0 : i32, i32
  }
  func.func @transform_4(%arg0: i32, %arg1: i32) -> (i32, i32, i32) {
    %c0_i32 = arith.constant 0 : i32
    %c0_i32_0 = arith.constant 0 : i32
    return %arg0, %arg1, %c0_i32 : i32, i32, i32
  }
}

</mosaic_0001>

<llo_original>
// kernel: patch_merging_2d.1
$region0: #{patch_merging_2d.1}
  #allocation0 [shape = 'u32[]', space=smem, size = 0x4, offset = 0x4, fixed_abs, tag = 'smem constant byte address 0x4 - core index']
  #allocation1 [shape = 'u32[144,128]{1,0:T(1,128)}', space=vmem, size = 0x12000, scoped, tag = 'internal scratch']
  %s0 = inlined_call_operand.vmem [shape: f32[16,2,8,128], index: 0, kind: input, shape index: {}]
  %s1 = inlined_call_operand.vmem [shape: bf16[128,128], index: 1, kind: input, shape index: {}]
  %s2 = inlined_call_operand.vmem [shape: bf16[128,128], index: 2, kind: input, shape index: {}]
  %s3 = inlined_call_operand.vmem [shape: f32[1,128], index: 3, kind: input, shape index: {}]
  %s4 = inlined_call_operand.hbm [shape: f32[16,8,128], index: 4, kind: output, shape index: {}]
  %s5 = sld [smem:[#allocation0]]
  $region49: #{patch_merging_2d.1} parent=0
    _
  %s7 = ssub.s32 1, %s5
  %s8 = scalar_select 0, %s7, %s5
  $region1: #{patch_merging_2d.1} parent=0
    #allocation2 [shape = 'u8[65536]{0}', space=vmem, size = 0x10000, scoped, tag = 'output window, operand 0']
    #allocation3 [shape = 's32[2]{0}', space=sflag, size = 0x8, scoped, tag = 'scoped memory for patch_merging_2d.1']
    %9 = vsyncpa [#allocation3], 0
    %s10 = scalar_lea.sflag [#allocation3], 1
    %11 = vsyncpa %s10, 0
    loop: start=0, step=1, limit=4
    $region2: #{patch_merging_2d.1} parent=1 // loop_pre_header
      _
    $region3: #{patch_merging_2d.1} parent=1 // loop_header
      %s13 = sphi 0, %s17
      %p14 = scmp.ge.s32.totalorder %s13, 4
      %s20 = sphi 0, %s32
      %s21 = sphi 0, %s28
      %s22 = sphi 0, %s20
      %s23 = sphi 0, %s21
      %s24 = sphi 0, %s22
      %s25 = sphi 0, %s23
      %s37 = sphi 0, %s39
      %s40 = sphi 0, %s37
      %s41 = sphi 0, %s40
      %s57 = sphi 0, %s41
      %s61 = sphi 0, %s61
      %s63 = sphi 0, %s61
      %s64 = sphi 0, %s63
      %s78 = sphi 0, %s64
      %s82 = sphi 0, %s82
      %s84 = sphi 0, %s82
      %s85 = sphi 0, %s84
      %s99 = sphi 0, %s85
      %s103 = sphi 0, %s103
      %s105 = sphi 0, %s103
      %s106 = sphi 0, %s105
      %s120 = sphi 0, %s106
      %s128 = sphi 0, %s130
      %s131 = sphi 0, %s128
      %s132 = sphi 0, %s131
      %s148 = sphi 0, %s132
    $region4: #{patch_merging_2d.1} parent=1 // loop_header_branch
      %16 = sbr.rel (%p14) target = $region8
    $region5: #{patch_merging_2d.1} parent=1 // loop_body
      %s18 = ssub.s32 %s13, 1
      %s19 = ssub.s32 %s13, 2
      %s26 = sadd.s32 1, %s21
      %p27 = scmp.ge.s32.totalorder %s26, 1
      %s28 = scalar_select %p27, 0, %s26
      %s29 = sadd.s32 1, %s20
      %s30 = scalar_select %p27, %s29, %s20
      %p31 = scmp.ge.s32.totalorder %s30, 2
      %s32 = scalar_select %p31, 0, %s30
      %s33 = ssub.s32 %s20, %s32
      %s34 = ssub.s32 %s21, %s28
      %s35 = sor.u32 %s33, %s34
      %p36 = scmp.eq.s32.totalorder %s35, 0
      %s38 = sadd.s32 %s37, 1
      %s39 = scalar_select %p36, %s37, %s38
      %p42 = pneg %p36
      %p43 = scmp.eq.s32.totalorder %s13, 1
      %p44 = por %p42, %p43
      %p45 = scmp.ne.s32.totalorder %s37, %s40
      %p46 = scmp.eq.s32.totalorder %s13, 0
      %p47 = por %p45, %p46
      %p48 = scmp.ne.s32.totalorder %s37, %s40
      %p49 = scmp.eq.s32.totalorder %s18, 1
      %p50 = por %p48, %p49
      %p51 = scmp.ne.s32.totalorder %s40, %s41
      %p52 = scmp.eq.s32.totalorder %s18, 0
      %p53 = por %p51, %p52
      %p54 = scmp.ne.s32.totalorder %s40, %s41
      %p55 = scmp.eq.s32.totalorder %s19, 1
      %p56 = por %p54, %p55
      %p58 = scmp.ne.s32.totalorder %s41, %s57
      %p59 = scmp.eq.s32.totalorder %s19, 0
      %p60 = por %p58, %p59
      %s62 = sadd.s32 %s61, 1
      %p65 = scmp.eq.s32.totalorder %s13, 1
      %p66 = scmp.ne.s32.totalorder %s61, %s63
      %p67 = scmp.eq.s32.totalorder %s13, 0
      %p68 = por %p66, %p67
      %p69 = scmp.ne.s32.totalorder %s61, %s63
      %p70 = scmp.eq.s32.totalorder %s18, 1
      %p71 = por %p69, %p70
      %p72 = scmp.ne.s32.totalorder %s63, %s64
      %p73 = scmp.eq.s32.totalorder %s18, 0
      %p74 = por %p72, %p73
      %p75 = scmp.ne.s32.totalorder %s63, %s64
      %p76 = scmp.eq.s32.totalorder %s19, 1
      %p77 = por %p75, %p76
      %p79 = scmp.ne.s32.totalorder %s64, %s78
      %p80 = scmp.eq.s32.totalorder %s19, 0
      %p81 = por %p79, %p80
      %s83 = sadd.s32 %s82, 1
      %p86 = scmp.eq.s32.totalorder %s13, 1
      %p87 = scmp.ne.s32.totalorder %s82, %s84
      %p88 = scmp.eq.s32.totalorder %s13, 0
      %p89 = por %p87, %p88
      %p90 = scmp.ne.s32.totalorder %s82, %s84
      %p91 = scmp.eq.s32.totalorder %s18, 1
      %p92 = por %p90, %p91
      %p93 = scmp.ne.s32.totalorder %s84, %s85
      %p94 = scmp.eq.s32.totalorder %s18, 0
      %p95 = por %p93, %p94
      %p96 = scmp.ne.s32.totalorder %s84, %s85
      %p97 = scmp.eq.s32.totalorder %s19, 1
      %p98 = por %p96, %p97
      %p100 = scmp.ne.s32.totalorder %s85, %s99
      %p101 = scmp.eq.s32.totalorder %s19, 0
      %p102 = por %p100, %p101
      %s104 = sadd.s32 %s103, 1
      %p107 = scmp.eq.s32.totalorder %s13, 1
      %p108 = scmp.ne.s32.totalorder %s103, %s105
      %p109 = scmp.eq.s32.totalorder %s13, 0
      %p110 = por %p108, %p109
      %p111 = scmp.ne.s32.totalorder %s103, %s105
      %p112 = scmp.eq.s32.totalorder %s18, 1
      %p113 = por %p111, %p112
      %p114 = scmp.ne.s32.totalorder %s105, %s106
      %p115 = scmp.eq.s32.totalorder %s18, 0
      %p116 = por %p114, %p115
      %p117 = scmp.ne.s32.totalorder %s105, %s106
      %p118 = scmp.eq.s32.totalorder %s19, 1
      %p119 = por %p117, %p118
      %p121 = scmp.ne.s32.totalorder %s106, %s120
      %p122 = scmp.eq.s32.totalorder %s19, 0
      %p123 = por %p121, %p122
      %s124 = ssub.s32 %s20, %s32
      %s125 = ssub.s32 %s21, %s28
      %s126 = sor.u32 %s124, %s125
      %p127 = scmp.eq.s32.totalorder %s126, 0
      %s129 = sadd.s32 %s128, 1
      %s130 = scalar_select %p127, %s128, %s129
      %p133 = pneg %p127
      %p134 = scmp.eq.s32.totalorder %s13, 1
      %p135 = por %p133, %p134
      %p136 = scmp.ne.s32.totalorder %s128, %s131
      %p137 = scmp.eq.s32.totalorder %s13, 0
      %p138 = por %p136, %p137
      %p139 = scmp.ne.s32.totalorder %s128, %s131
      %p140 = scmp.eq.s32.totalorder %s18, 1
      %p141 = por %p139, %p140
      %p142 = scmp.ne.s32.totalorder %s131, %s132
      %p143 = scmp.eq.s32.totalorder %s18, 0
      %p144 = por %p142, %p143
      %p145 = scmp.ne.s32.totalorder %s131, %s132
      %p146 = scmp.eq.s32.totalorder %s19, 1
      %p147 = por %p145, %p146
      %p149 = scmp.ne.s32.totalorder %s132, %s148
      %p150 = scmp.eq.s32.totalorder %s19, 0
      %p151 = por %p149, %p150
      %p152 = scmp.le.s32.totalorder 1, %s13
      %p153 = scmp.lt.s32.totalorder %s13, 3
      %p154 = pnand %p152, %p153
      %p155 = pneg %p154
      // Predicated region
      $region9: #{patch_merging_2d.1} parent=5 // pred_check
        _
      $region10: #{patch_merging_2d.1} parent=5 // pred_check_branch
        %157 = sbr.rel (%p154) target = $region12
      $region11: #{patch_merging_2d.1} parent=5 // pred_region
        %s158 = ssub.s32 %s13, 1
        // Predicated region
        $region13: #{patch_merging_2d.1} parent=11 // pred_check
          %p159 = pneg %p74
        $region14: #{patch_merging_2d.1} parent=11 // pred_check_branch
          %161 = sbr.rel (%p159) target = $region16
        $region15: #{patch_merging_2d.1} parent=11 // pred_region
          _
        $region16: #{patch_merging_2d.1} parent=11 // pred_fallthru
          _
        // Predicated region
        $region17: #{patch_merging_2d.1} parent=11 // pred_check
          %p162 = pneg %p95
        $region18: #{patch_merging_2d.1} parent=11 // pred_check_branch
          %164 = sbr.rel (%p162) target = $region20
        $region19: #{patch_merging_2d.1} parent=11 // pred_region
          _
        $region20: #{patch_merging_2d.1} parent=11 // pred_fallthru
          _
        // Predicated region
        $region21: #{patch_merging_2d.1} parent=11 // pred_check
          %p165 = pneg %p116
        $region22: #{patch_merging_2d.1} parent=11 // pred_check_branch
          %167 = sbr.rel (%p165) target = $region24
        $region23: #{patch_merging_2d.1} parent=11 // pred_region
          _
        $region24: #{patch_merging_2d.1} parent=11 // pred_fallthru
          _
      $region12: #{patch_merging_2d.1} parent=5 // pred_fallthru
        _
      %p168 = scmp.lt.s32.totalorder %s13, 2
      // Predicated region
      $region25: #{patch_merging_2d.1} parent=5 // pred_check
        %p169 = pneg %p168
      $region26: #{patch_merging_2d.1} parent=5 // pred_check_branch
        %171 = sbr.rel (%p169) target = $region28
      $region27: #{patch_merging_2d.1} parent=5 // pred_region
        // Predicated region
        $region29: #{patch_merging_2d.1} parent=27 // pred_check
          %p172 = pneg %p47
        $region30: #{patch_merging_2d.1} parent=27 // pred_check_branch
          %174 = sbr.rel (%p172) target = $region32
        $region31: #{patch_merging_2d.1} parent=27 // pred_region
          %s175 = smul.u32 8, %s20
          %p176 = scmp.lt.s32.totalorder %s175, 15
          %s177 = scalar_select %p176, %s175, 15
          %p178 = scmp.lt.s32.totalorder %s21, 0
          %s179 = scalar_select %p178, %s21, 0
          %s180 = smul.addr %s177, 2
          %s181 = sadd.s32 %s179, %s180
          %s182 = smul.addr %s181, 8
          %s183 = scalar_lea.vmem %s0, %s182
          %s184 = smul.u32 8, %s20
        $region32: #{patch_merging_2d.1} parent=27 // pred_fallthru
          _
      $region28: #{patch_merging_2d.1} parent=5 // pred_fallthru
        _
      %p185 = scmp.le.s32.totalorder 1, %s13
      %p186 = scmp.lt.s32.totalorder %s13, 3
      %p187 = pnand %p185, %p186
      %p188 = pneg %p187
      // Predicated region
      $region33: #{patch_merging_2d.1} parent=5 // pred_check
        _
      $region34: #{patch_merging_2d.1} parent=5 // pred_check_branch
        %190 = sbr.rel (%p187) target = $region36
      $region35: #{patch_merging_2d.1} parent=5 // pred_region
        %s191 = ssub.s32 %s13, 1
        %s192 = smul.u32 8, %s22
        %p193 = scmp.lt.s32.totalorder %s192, 15
        %s194 = scalar_select %p193, %s192, 15
        %p195 = scmp.lt.s32.totalorder %s23, 0
        %s196 = scalar_select %p195, %s23, 0
        %s197 = smul.addr %s194, 2
        %s198 = sadd.s32 %s196, %s197
        %s199 = smul.addr %s198, 8
        %s200 = scalar_lea.vmem %s0, %s199
        %p201 = pneg %p53
        %p202 = pneg %p50
        %p203 = pneg %p74
        %p204 = pneg %p71
        %p205 = pneg %p95
        %p206 = pneg %p92
        %p207 = pneg %p116
        %p208 = pneg %p113
        %p209 = pneg %p144
        %p210 = pneg %p141
        %s211 = sand.u32 %s131, 1
        %s212 = scalar_lea.sflag [#allocation3], %s211
        %s213 = sand.u32 %s131, 1
        %s214 = smul.addr %s213, 64
        %s215 = scalar_lea.vmem [#allocation2], %s214
        %s216 = smul.u32 8, %s22
        %p217 = scmp.lt.s32.totalorder %s216, 15
        %s218 = scalar_select %p217, %s216, 15
        %p219 = scmp.lt.s32.totalorder %s23, 0
        %s220 = scalar_select %p219, %s23, 0
        %s221 = smul.addr %s218, 2
        %s222 = sadd.s32 %s220, %s221
        %s223 = smul.addr %s222, 8
        %s224 = scalar_lea.vmem %s0, %s223
        %s225 = smul.u32 8, %s22
        %s226 = smul.u32 8, %s22
        %v228 = vld [vmem:[%s224] sm:$0xff]
        %v229 = vld [vmem:[%s224 + $0x8] sm:$0xff]
        %v230 = vld [vmem:[%s224 + $0x10] sm:$0xff]
        %v231 = vld [vmem:[%s224 + $0x18] sm:$0xff]
        %v232 = vld [vmem:[%s224 + $0x20] sm:$0xff]
        %v233 = vld [vmem:[%s224 + $0x28] sm:$0xff]
        %v234 = vld [vmem:[%s224 + $0x30] sm:$0xff]
        %v235 = vld [vmem:[%s224 + $0x38] sm:$0xff]
        %v236 = vld [vmem:[%s224 + $0x40] sm:$0xff]
        %v237 = vld [vmem:[%s224 + $0x48] sm:$0xff]
        %v238 = vld [vmem:[%s224 + $0x50] sm:$0xff]
        %v239 = vld [vmem:[%s224 + $0x58] sm:$0xff]
        %v240 = vld [vmem:[%s224 + $0x60] sm:$0xff]
        %v241 = vld [vmem:[%s224 + $0x68] sm:$0xff]
        %v242 = vld [vmem:[%s224 + $0x70] sm:$0xff]
        %v243 = vld [vmem:[%s224 + $0x78] sm:$0xff]
        %244 = vadd.xlane.f32.xlu0 %v228
        %v245 = vpop.xlane.xlu0 %244
        %246 = vadd.xlane.f32.xlu0 %v230
        %v247 = vpop.xlane.xlu0 %246
        %248 = vadd.xlane.f32.xlu0 %v232
        %v249 = vpop.xlane.xlu0 %248
        %250 = vadd.xlane.f32.xlu0 %v234
        %v251 = vpop.xlane.xlu0 %250
        %252 = vadd.xlane.f32.xlu0 %v236
        %v253 = vpop.xlane.xlu0 %252
        %254 = vadd.xlane.f32.xlu0 %v238
        %v255 = vpop.xlane.xlu0 %254
        %256 = vadd.xlane.f32.xlu0 %v240
        %v257 = vpop.xlane.xlu0 %256
        %258 = vadd.xlane.f32.xlu0 %v242
        %v259 = vpop.xlane.xlu0 %258
        %260 = vadd.xlane.f32.xlu0 %v229
        %v261 = vpop.xlane.xlu0 %260
        %262 = vadd.xlane.f32.xlu0 %v231
        %v263 = vpop.xlane.xlu0 %262
        %264 = vadd.xlane.f32.xlu0 %v233
        %v265 = vpop.xlane.xlu0 %264
        %266 = vadd.xlane.f32.xlu0 %v235
        %v267 = vpop.xlane.xlu0 %266
        %268 = vadd.xlane.f32.xlu0 %v237
        %v269 = vpop.xlane.xlu0 %268
        %270 = vadd.xlane.f32.xlu0 %v239
        %v271 = vpop.xlane.xlu0 %270
        %272 = vadd.xlane.f32.xlu0 %v241
        %v273 = vpop.xlane.xlu0 %272
        %274 = vadd.xlane.f32.xlu0 %v243
        %v275 = vpop.xlane.xlu0 %274
        %v276 = vadd.f32 %v245, %v261
        %v277 = vadd.f32 %v247, %v263
        %v278 = vadd.f32 %v249, %v265
        %v279 = vadd.f32 %v251, %v267
        %v280 = vadd.f32 %v253, %v269
        %v281 = vadd.f32 %v255, %v271
        %v282 = vadd.f32 %v257, %v273
        %v283 = vadd.f32 %v259, %v275
        %v284 = vmul.f32 %v228, %v228
        %v285 = vmul.f32 %v230, %v230
        %v286 = vmul.f32 %v232, %v232
        %v287 = vmul.f32 %v234, %v234
        %v288 = vmul.f32 %v236, %v236
        %v289 = vmul.f32 %v238, %v238
        %v290 = vmul.f32 %v240, %v240
        %v291 = vmul.f32 %v242, %v242
        %292 = vadd.xlane.f32.xlu0 %v284
        %v293 = vpop.xlane.xlu0 %292
        %294 = vadd.xlane.f32.xlu0 %v285
        %v295 = vpop.xlane.xlu0 %294
        %296 = vadd.xlane.f32.xlu0 %v286
        %v297 = vpop.xlane.xlu0 %296
        %298 = vadd.xlane.f32.xlu0 %v287
        %v299 = vpop.xlane.xlu0 %298
        %300 = vadd.xlane.f32.xlu0 %v288
        %v301 = vpop.xlane.xlu0 %300
        %302 = vadd.xlane.f32.xlu0 %v289
        %v303 = vpop.xlane.xlu0 %302
        %304 = vadd.xlane.f32.xlu0 %v290
        %v305 = vpop.xlane.xlu0 %304
        %306 = vadd.xlane.f32.xlu0 %v291
        %v307 = vpop.xlane.xlu0 %306
        %v308 = vmul.f32 %v229, %v229
        %v309 = vmul.f32 %v231, %v231
        %v310 = vmul.f32 %v233, %v233
        %v311 = vmul.f32 %v235, %v235
        %v312 = vmul.f32 %v237, %v237
        %v313 = vmul.f32 %v239, %v239
        %v314 = vmul.f32 %v241, %v241
        %v315 = vmul.f32 %v243, %v243
        %316 = vadd.xlane.f32.xlu0 %v308
        %v317 = vpop.xlane.xlu0 %316
        %318 = vadd.xlane.f32.xlu0 %v309
        %v319 = vpop.xlane.xlu0 %318
        %320 = vadd.xlane.f32.xlu0 %v310
        %v321 = vpop.xlane.xlu0 %320
        %322 = vadd.xlane.f32.xlu0 %v311
        %v323 = vpop.xlane.xlu0 %322
        %324 = vadd.xlane.f32.xlu0 %v312
        %v325 = vpop.xlane.xlu0 %324
        %326 = vadd.xlane.f32.xlu0 %v313
        %v327 = vpop.xlane.xlu0 %326
        %328 = vadd.xlane.f32.xlu0 %v314
        %v329 = vpop.xlane.xlu0 %328
        %330 = vadd.xlane.f32.xlu0 %v315
        %v331 = vpop.xlane.xlu0 %330
        %v332 = vadd.f32 %v293, %v317
        %v333 = vadd.f32 %v295, %v319
        %v334 = vadd.f32 %v297, %v321
        %v335 = vadd.f32 %v299, %v323
        %v336 = vadd.f32 %v301, %v325
        %v337 = vadd.f32 %v303, %v327
        %v338 = vadd.f32 %v305, %v329
        %v339 = vadd.f32 %v307, %v331
        %v340 = vmul.f32 %v276, 0.00390625
        %v341 = vmul.f32 %v277, 0.00390625
        %v342 = vmul.f32 %v278, 0.00390625
        %v343 = vmul.f32 %v279, 0.00390625
        %v344 = vmul.f32 %v280, 0.00390625
        %v345 = vmul.f32 %v281, 0.00390625
        %v346 = vmul.f32 %v282, 0.00390625
        %v347 = vmul.f32 %v283, 0.00390625
        %v348 = vmul.f32 %v332, 0.00390625
        %v349 = vmul.f32 %v333, 0.00390625
        %v350 = vmul.f32 %v334, 0.00390625
        %v351 = vmul.f32 %v335, 0.00390625
        %v352 = vmul.f32 %v336, 0.00390625
        %v353 = vmul.f32 %v337, 0.00390625
        %v354 = vmul.f32 %v338, 0.00390625
        %v355 = vmul.f32 %v339, 0.00390625
        %v356 = vmul.f32 %v340, %v340
        %v357 = vmul.f32 %v341, %v341
        %v358 = vmul.f32 %v342, %v342
        %v359 = vmul.f32 %v343, %v343
        %v360 = vmul.f32 %v344, %v344
        %v361 = vmul.f32 %v345, %v345
        %v362 = vmul.f32 %v346, %v346
        %v363 = vmul.f32 %v347, %v347
        %v364 = vsub.f32 %v348, %v356
        %v365 = vsub.f32 %v349, %v357
        %v366 = vsub.f32 %v350, %v358
        %v367 = vsub.f32 %v351, %v359
        %v368 = vsub.f32 %v352, %v360
        %v369 = vsub.f32 %v353, %v361
        %v370 = vsub.f32 %v354, %v362
        %v371 = vsub.f32 %v355, %v363
        %v372 = vadd.f32 %v364, 1e-05
        %v373 = vadd.f32 %v365, 1e-05
        %v374 = vadd.f32 %v366, 1e-05
        %v375 = vadd.f32 %v367, 1e-05
        %v376 = vadd.f32 %v368, 1e-05
        %v377 = vadd.f32 %v369, 1e-05
        %v378 = vadd.f32 %v370, 1e-05
        %v379 = vadd.f32 %v371, 1e-05
        %v380 = vrsqrt.pop %v372
        %v381 = vrsqrt.pop %v373
        %v382 = vrsqrt.pop %v374
        %v383 = vrsqrt.pop %v375
        %v384 = vrsqrt.pop %v376
        %v385 = vrsqrt.pop %v377
        %v386 = vrsqrt.pop %v378
        %v387 = vrsqrt.pop %v379
        %v388 = vld [vmem:[%s1] sm:$0xf]
        %v389 = vld [vmem:[%s1 + $0x4] sm:$0xf]
        %v390 = vld [vmem:[%s1 + $0x8] sm:$0xf]
        %v391 = vld [vmem:[%s1 + $0xc] sm:$0xf]
        %v392 = vld [vmem:[%s1 + $0x10] sm:$0xf]
        %v393 = vld [vmem:[%s1 + $0x14] sm:$0xf]
        %v394 = vld [vmem:[%s1 + $0x18] sm:$0xf]
        %v395 = vld [vmem:[%s1 + $0x1c] sm:$0xf]
        %v396 = vld [vmem:[%s1 + $0x20] sm:$0xf]
        %v397 = vld [vmem:[%s1 + $0x24] sm:$0xf]
        %v398 = vld [vmem:[%s1 + $0x28] sm:$0xf]
        %v399 = vld [vmem:[%s1 + $0x2c] sm:$0xf]
        %v400 = vld [vmem:[%s1 + $0x30] sm:$0xf]
        %v401 = vld [vmem:[%s1 + $0x34] sm:$0xf]
        %v402 = vld [vmem:[%s1 + $0x38] sm:$0xf]
        %v403 = vld [vmem:[%s1 + $0x3c] sm:$0xf]
        %v404 = vld [vmem:[%s2] sm:$0xf]
        %v405 = vld [vmem:[%s2 + $0x4] sm:$0xf]
        %v406 = vld [vmem:[%s2 + $0x8] sm:$0xf]
        %v407 = vld [vmem:[%s2 + $0xc] sm:$0xf]
        %v408 = vld [vmem:[%s2 + $0x10] sm:$0xf]
        %v409 = vld [vmem:[%s2 + $0x14] sm:$0xf]
        %v410 = vld [vmem:[%s2 + $0x18] sm:$0xf]
        %v411 = vld [vmem:[%s2 + $0x1c] sm:$0xf]
        %v412 = vld [vmem:[%s2 + $0x20] sm:$0xf]
        %v413 = vld [vmem:[%s2 + $0x24] sm:$0xf]
        %v414 = vld [vmem:[%s2 + $0x28] sm:$0xf]
        %v415 = vld [vmem:[%s2 + $0x2c] sm:$0xf]
        %v416 = vld [vmem:[%s2 + $0x30] sm:$0xf]
        %v417 = vld [vmem:[%s2 + $0x34] sm:$0xf]
        %v418 = vld [vmem:[%s2 + $0x38] sm:$0xf]
        %v419 = vld [vmem:[%s2 + $0x3c] sm:$0xf]
        %v420 = vsub.f32 %v228, %v340
        %v421 = vsub.f32 %v230, %v341
        %v422 = vsub.f32 %v232, %v342
        %v423 = vsub.f32 %v234, %v343
        %v424 = vsub.f32 %v236, %v344
        %v425 = vsub.f32 %v238, %v345
        %v426 = vsub.f32 %v240, %v346
        %v427 = vsub.f32 %v242, %v347
        %v428 = vmul.f32 %v420, %v380
        %v429 = vmul.f32 %v421, %v381
        %v430 = vmul.f32 %v422, %v382
        %v431 = vmul.f32 %v423, %v383
        %v432 = vmul.f32 %v424, %v384
        %v433 = vmul.f32 %v425, %v385
        %v434 = vmul.f32 %v426, %v386
        %v435 = vmul.f32 %v427, %v387
        %v436 = vpack.c.bf16 %v429, %v428
        %v437 = vpack.c.bf16 %v431, %v430
        %v438 = vpack.c.bf16 %v433, %v432
        %v439 = vpack.c.bf16 %v435, %v434
        %v440 = vsub.f32 %v229, %v340
        %v441 = vsub.f32 %v231, %v341
        %v442 = vsub.f32 %v233, %v342
        %v443 = vsub.f32 %v235, %v343
        %v444 = vsub.f32 %v237, %v344
        %v445 = vsub.f32 %v239, %v345
        %v446 = vsub.f32 %v241, %v346
        %v447 = vsub.f32 %v243, %v347
        %v448 = vmul.f32 %v440, %v380
        %v449 = vmul.f32 %v441, %v381
        %v450 = vmul.f32 %v442, %v382
        %v451 = vmul.f32 %v443, %v383
        %v452 = vmul.f32 %v444, %v384
        %v453 = vmul.f32 %v445, %v385
        %v454 = vmul.f32 %v446, %v386
        %v455 = vmul.f32 %v447, %v387
        %v456 = vpack.c.bf16 %v449, %v448
        %v457 = vpack.c.bf16 %v451, %v450
        %v458 = vpack.c.bf16 %v453, %v452
        %v459 = vpack.c.bf16 %v455, %v454
        %v476 = vunpack.c.l.b16 %v404
        %v477 = vunpack.c.l.b16 %v405
        %v478 = vunpack.c.l.b16 %v406
        %v479 = vunpack.c.l.b16 %v407
        %v480 = vunpack.c.l.b16 %v408
        %v481 = vunpack.c.l.b16 %v409
        %v482 = vunpack.c.l.b16 %v410
        %v483 = vunpack.c.l.b16 %v411
        %v484 = vunpack.c.l.b16 %v412
        %v485 = vunpack.c.l.b16 %v413
        %v486 = vunpack.c.l.b16 %v414
        %v487 = vunpack.c.l.b16 %v415
        %v488 = vunpack.c.l.b16 %v416
        %v489 = vunpack.c.l.b16 %v417
        %v490 = vunpack.c.l.b16 %v418
        %v491 = vunpack.c.l.b16 %v419
        %v492 = vpack.c.b16 %v477, %v476
        %v493 = vpack.c.b16 %v479, %v478
        %v494 = vpack.c.b16 %v481, %v480
        %v495 = vpack.c.b16 %v483, %v482
        %v496 = vpack.c.b16 %v485, %v484
        %v497 = vpack.c.b16 %v487, %v486
        %v498 = vpack.c.b16 %v489, %v488
        %v499 = vpack.c.b16 %v491, %v490
        %508 = vmatprep.subr.bf16.mxu0 0
        %509 = vmatpush1.bf16.msra.mxu0 %v499
        %510 = vmatprep.subr.bf16.mxu0 0
        %511 = vmatpush1.bf16.msra.mxu0 %v498
        %512 = vmatprep.subr.bf16.mxu0 0
        %513 = vmatpush1.bf16.msra.mxu0 %v497
        %514 = vmatprep.subr.bf16.mxu0 0
        %515 = vmatpush1.bf16.msra.mxu0 %v496
        %516 = vmatprep.subr.bf16.mxu0 0
        %517 = vmatpush1.bf16.msra.mxu0 %v495
        %518 = vmatprep.subr.bf16.mxu0 0
        %519 = vmatpush1.bf16.msra.mxu0 %v494
        %520 = vmatprep.subr.bf16.mxu0 0
        %521 = vmatpush1.bf16.msra.mxu0 %v493
        %522 = vmatprep.subr.bf16.mxu0 0
        %523 = vmatpush1.bf16.msra.mxu0 %v492
        %524 = vmatprep.subr.bf16.mxu0 0
        %525 = vmatpush2.bf16.msra.mxu0 0
        %526 = vmatprep.subr.bf16.mxu0 0
        %527 = vmatpush2.bf16.msra.mxu0 0
        %528 = vmatprep.subr.bf16.mxu0 0
        %529 = vmatpush2.bf16.msra.mxu0 0
        %530 = vmatprep.subr.bf16.mxu0 0
        %531 = vmatpush2.bf16.msra.mxu0 0
        %532 = vmatprep.subr.bf16.mxu0 0
        %533 = vmatpush2.bf16.msra.mxu0 0
        %534 = vmatprep.subr.bf16.mxu0 0
        %535 = vmatpush2.bf16.msra.mxu0 0
        %536 = vmatprep.subr.bf16.mxu0 0
        %537 = vmatpush2.bf16.msra.mxu0 0
        %538 = vmatprep.subr.bf16.mxu0 0
        %539 = vmatpush2.bf16.msra.mxu0 0
        %540 = vmatprep.mubr.bf16.mxu0 0
        %541 = vmatmul.mubr.bf16.gmra.mxu0 %v456
        %v542 = vpop.f32.mrf.mxu0
        %v543 = vadd.f32 0.0, %v542
        %v544 = vpop.f32.mrf.mxu0
        %v545 = vpop.f32.mrf.mxu0
        %v546 = vadd.f32 0.0, %v545
        %v547 = vpop.f32.mrf.mxu0
        %548 = vmatprep.mubr.bf16.mxu0 0
        %549 = vmatmul.mubr.bf16.gmra.mxu0 %v457
        %v550 = vpop.f32.mrf.mxu0
        %v551 = vadd.f32 0.0, %v550
        %v552 = vpop.f32.mrf.mxu0
        %v553 = vpop.f32.mrf.mxu0
        %v554 = vadd.f32 0.0, %v553
        %v555 = vpop.f32.mrf.mxu0
        %556 = vmatprep.mubr.bf16.mxu0 0
        %557 = vmatmul.mubr.bf16.gmra.mxu0 %v458
        %v558 = vpop.f32.mrf.mxu0
        %v559 = vadd.f32 0.0, %v558
        %v560 = vpop.f32.mrf.mxu0
        %v561 = vpop.f32.mrf.mxu0
        %v562 = vadd.f32 0.0, %v561
        %v563 = vpop.f32.mrf.mxu0
        %564 = vmatprep.mubr.bf16.mxu0 0
        %565 = vmatmul.mubr.bf16.gmra.mxu0 %v459
        %v566 = vpop.f32.mrf.mxu0
        %v567 = vadd.f32 0.0, %v566
        %v568 = vpop.f32.mrf.mxu0
        %v569 = vpop.f32.mrf.mxu0
        %v570 = vadd.f32 0.0, %v569
        %v571 = vpop.f32.mrf.mxu0
        %572 = vdwg.mxu0
        %v589 = vunpack.c.l.b16 %v388
        %v590 = vunpack.c.l.b16 %v389
        %v591 = vunpack.c.l.b16 %v390
        %v592 = vunpack.c.l.b16 %v391
        %v593 = vunpack.c.l.b16 %v392
        %v594 = vunpack.c.l.b16 %v393
        %v595 = vunpack.c.l.b16 %v394
        %v596 = vunpack.c.l.b16 %v395
        %v597 = vunpack.c.l.b16 %v396
        %v598 = vunpack.c.l.b16 %v397
        %v599 = vunpack.c.l.b16 %v398
        %v600 = vunpack.c.l.b16 %v399
        %v601 = vunpack.c.l.b16 %v400
        %v602 = vunpack.c.l.b16 %v401
        %v603 = vunpack.c.l.b16 %v402
        %v604 = vunpack.c.l.b16 %v403
        %v605 = vpack.c.b16 %v590, %v589
        %v606 = vpack.c.b16 %v592, %v591
        %v607 = vpack.c.b16 %v594, %v593
        %v608 = vpack.c.b16 %v596, %v595
        %v609 = vpack.c.b16 %v598, %v597
        %v610 = vpack.c.b16 %v600, %v599
        %v611 = vpack.c.b16 %v602, %v601
        %v612 = vpack.c.b16 %v604, %v603
        %621 = vmatprep.subr.bf16.mxu0 0
        %622 = vmatpush1.bf16.msra.mxu0 %v612
        %623 = vmatprep.subr.bf16.mxu0 0
        %624 = vmatpush1.bf16.msra.mxu0 %v611
        %625 = vmatprep.subr.bf16.mxu0 0
        %626 = vmatpush1.bf16.msra.mxu0 %v610
        %627 = vmatprep.subr.bf16.mxu0 0
        %628 = vmatpush1.bf16.msra.mxu0 %v609
        %629 = vmatprep.subr.bf16.mxu0 0
        %630 = vmatpush1.bf16.msra.mxu0 %v608
        %631 = vmatprep.subr.bf16.mxu0 0
        %632 = vmatpush1.bf16.msra.mxu0 %v607
        %633 = vmatprep.subr.bf16.mxu0 0
        %634 = vmatpush1.bf16.msra.mxu0 %v606
        %635 = vmatprep.subr.bf16.mxu0 0
        %636 = vmatpush1.bf16.msra.mxu0 %v605
        %637 = vmatprep.subr.bf16.mxu0 0
        %638 = vmatpush2.bf16.msra.mxu0 0
        %639 = vmatprep.subr.bf16.mxu0 0
        %640 = vmatpush2.bf16.msra.mxu0 0
        %641 = vmatprep.subr.bf16.mxu0 0
        %642 = vmatpush2.bf16.msra.mxu0 0
        %643 = vmatprep.subr.bf16.mxu0 0
        %644 = vmatpush2.bf16.msra.mxu0 0
        %645 = vmatprep.subr.bf16.mxu0 0
        %646 = vmatpush2.bf16.msra.mxu0 0
        %647 = vmatprep.subr.bf16.mxu0 0
        %648 = vmatpush2.bf16.msra.mxu0 0
        %649 = vmatprep.subr.bf16.mxu0 0
        %650 = vmatpush2.bf16.msra.mxu0 0
        %651 = vmatprep.subr.bf16.mxu0 0
        %652 = vmatpush2.bf16.msra.mxu0 0
        %653 = vmatprep.mubr.bf16.mxu0 0
        %654 = vmatmul.mubr.bf16.gmra.mxu0 %v436
        %v655 = vpop.f32.mrf.mxu0
        %v656 = vadd.f32 %v543, %v655
        %v657 = vpop.f32.mrf.mxu0
        %v658 = vpop.f32.mrf.mxu0
        %v659 = vadd.f32 %v546, %v658
        %v660 = vpop.f32.mrf.mxu0
        %661 = vmatprep.mubr.bf16.mxu0 0
        %662 = vmatmul.mubr.bf16.gmra.mxu0 %v437
        %v663 = vpop.f32.mrf.mxu0
        %v664 = vadd.f32 %v551, %v663
        %v665 = vpop.f32.mrf.mxu0
        %v666 = vpop.f32.mrf.mxu0
        %v667 = vadd.f32 %v554, %v666
        %v668 = vpop.f32.mrf.mxu0
        %669 = vmatprep.mubr.bf16.mxu0 0
        %670 = vmatmul.mubr.bf16.gmra.mxu0 %v438
        %v671 = vpop.f32.mrf.mxu0
        %v672 = vadd.f32 %v559, %v671
        %v673 = vpop.f32.mrf.mxu0
        %v674 = vpop.f32.mrf.mxu0
        %v675 = vadd.f32 %v562, %v674
        %v676 = vpop.f32.mrf.mxu0
        %677 = vmatprep.mubr.bf16.mxu0 0
        %678 = vmatmul.mubr.bf16.gmra.mxu0 %v439
        %v679 = vpop.f32.mrf.mxu0
        %v680 = vadd.f32 %v567, %v679
        %v681 = vpop.f32.mrf.mxu0
        %v682 = vpop.f32.mrf.mxu0
        %v683 = vadd.f32 %v570, %v682
        %v684 = vpop.f32.mrf.mxu0
        %685 = vdwg.mxu0
        %v686 = vld [vmem:[%s3] sm:$0x1]
        %v688 = vlaneseq
        %v689 = vshrl.u32 %v688, 7
        %v690 = vsub.s32 0, %v689
        %v691 = vrot.slane %v686, %v690
        %v693 = vadd.f32 %v656, %v691
        %v694 = vadd.f32 %v659, %v691
        %v695 = vadd.f32 %v664, %v691
        %v696 = vadd.f32 %v667, %v691
        %v697 = vadd.f32 %v672, %v691
        %v698 = vadd.f32 %v675, %v691
        %v699 = vadd.f32 %v680, %v691
        %v700 = vadd.f32 %v683, %v691
        %701 = vst [vmem:[%s215] sm:$0xff] %v693
        %702 = vst [vmem:[%s215 + $0x8] sm:$0xff] %v694
        %703 = vst [vmem:[%s215 + $0x10] sm:$0xff] %v695
        %704 = vst [vmem:[%s215 + $0x18] sm:$0xff] %v696
        %705 = vst [vmem:[%s215 + $0x20] sm:$0xff] %v697
        %706 = vst [vmem:[%s215 + $0x28] sm:$0xff] %v698
        %707 = vst [vmem:[%s215 + $0x30] sm:$0xff] %v699
        %708 = vst [vmem:[%s215 + $0x38] sm:$0xff] %v700
        %s709 = sand.u32 %s131, 1
        %s710 = scalar_lea.sflag [#allocation3], %s709
        %s711 = sand.u32 %s131, 1
        %s712 = smul.addr %s711, 64
        %s713 = scalar_lea.vmem [#allocation2], %s712
        // Predicated region
        $region37: #{patch_merging_2d.1} parent=35 // pred_check
          %p714 = pneg %p141
        $region38: #{patch_merging_2d.1} parent=35 // pred_check_branch
          %716 = sbr.rel (%p714) target = $region40
        $region39: #{patch_merging_2d.1} parent=35 // pred_region
          %s717 = smul.u32 8, %s22
          %s719 = ssub.s32 1024, 1024
          %720 = vsyncadd %s710, %s719
          %s721 = sadd.s32 %s23, %s717
          %s722 = smul.addr %s721, 128
          %s723 = scalar_lea.hbm %s4, %s722
          %s724 = sshll.u32 %s713, 4
          %s725 = int_to_ptr.vmem [resolvable:$true] %s724
          %730 = dma.vmem_to_hbm [thread:$0]  %s725, 1024, %s723, %s710, 128, 128, 8
        $region40: #{patch_merging_2d.1} parent=35 // pred_fallthru
          _
      $region36: #{patch_merging_2d.1} parent=5 // pred_fallthru
        _
      %p731 = scmp.le.s32.totalorder 2, %s13
      // Predicated region
      $region41: #{patch_merging_2d.1} parent=5 // pred_check
        %p732 = pneg %p731
      $region42: #{patch_merging_2d.1} parent=5 // pred_check_branch
        %734 = sbr.rel (%p732) target = $region44
      $region43: #{patch_merging_2d.1} parent=5 // pred_region
        %s735 = ssub.s32 %s13, 2
        // Predicated region
        $region45: #{patch_merging_2d.1} parent=43 // pred_check
          %p736 = pneg %p147
        $region46: #{patch_merging_2d.1} parent=43 // pred_check_branch
          %738 = sbr.rel (%p736) target = $region48
        $region47: #{patch_merging_2d.1} parent=43 // pred_region
          %s739 = sand.u32 %s132, 1
          %s740 = scalar_lea.sflag [#allocation3], %s739
          %s741 = sand.u32 %s132, 1
          %s742 = smul.addr %s741, 64
          %s743 = scalar_lea.vmem [#allocation2], %s742
          %744 = dma.done %s740, 1024
        $region48: #{patch_merging_2d.1} parent=43 // pred_fallthru
          _
      $region44: #{patch_merging_2d.1} parent=5 // pred_fallthru
        _
    $region6: #{patch_merging_2d.1} parent=1 // loop_footer
      %s17 = sadd.s32 1, %s13
    $region7: #{patch_merging_2d.1} parent=1 // loop_footer_branch
      %12 = sbr.rel target = $region3
    $region8: #{patch_merging_2d.1} parent=1 // loop_exit
      _
    %745 = vsyncpa [#allocation3], 1
    %s746 = scalar_lea.sflag [#allocation3], 1
    %747 = vsyncpa %s746, 1

</llo_original>
